<compile_context>
chip_gen: v7x
topology: tpu7x:2x2x1
jax: 0.10.0
libtpu: 0.0.40
codegen_flags: <defaults>
</compile_context>

<pallas_src>
import numpy as np
import jax
import jax.numpy as jnp
from jax.experimental import pallas as pl
from jax.experimental.pallas import tpu as pltpu


def sinusoid_table(max_positions, dim, dtype=jnp.float32):
    """Same table as PyTorch's _get_sinusoid_encoding_table (host-side, once)."""
    pos = np.arange(max_positions, dtype=np.float64)[:, None]        # (P, 1)
    j = np.arange(dim, dtype=np.float64)[None, :]                    # (1, D)
    angle = pos / np.power(10000.0, 2.0 * np.floor(j / 2.0) / dim)   # (P, D)
    table = np.empty((max_positions, dim), dtype=np.float64)
    table[:, 0::2] = np.sin(angle[:, 0::2])
    table[:, 1::2] = np.cos(angle[:, 1::2])
    return jnp.asarray(table, dtype=dtype)


def _pos_encoding_kernel(x_ref, pos_ref, o_ref):
    # x_ref: (bb, ts, D) batch/seq tile; pos_ref: (ts, D) table tile.
    # Pure VPU add in native dtype (trailing-dim broadcast over the batch tile);
    # cast only at the output store (no-op when dtypes already match).
    o_ref[...] = (x_ref[...] + pos_ref[...]).astype(o_ref.dtype)


def _pick_seq_tile(S, D, itemsize, budget_bytes):
    """Largest divisor of S that is a multiple of 8 and fits the per-block
    budget; fall back to full S (full second-minor dim is always layout-legal)."""
    max_rows = max(budget_bytes // max(D * itemsize, 1), 1)
    for ts in range(min(S, max_rows), 0, -1):
        if S % ts == 0 and ts % 8 == 0:
            return ts
    return S


def _pick_batch_tile(B, per_batch_bytes, budget_bytes):
    """Largest divisor of B whose (bb, ts, D) block fits the budget."""
    cap = max(budget_bytes // max(per_batch_bytes, 1), 1)
    for bb in range(min(B, cap), 0, -1):
        if B % bb == 0:
            return bb
    return 1


def positional_encoding(x, pos_table, *, block_budget_bytes=2 << 20):
    """x: (B, S, D); pos_table: (max_positions, D) with max_positions >= S."""
    B, S, D = x.shape
    # Slice the first S positions in the wrapper (cheap XLA slice) and cast to
    # x.dtype so the kernel does no conversions.
    pos = jax.lax.slice(pos_table, (0, 0), (S, D)).astype(x.dtype)

    itemsize = jnp.dtype(x.dtype).itemsize
    ts = _pick_seq_tile(S, D, itemsize, block_budget_bytes)
    bb = _pick_batch_tile(B, ts * D * itemsize, block_budget_bytes)

    # Seq axis is the slow (outer) grid axis: the table block index depends
    # only on it, so when ts == S (common case) the table is loaded once and
    # stays VMEM-resident across the whole grid.
    grid = (S // ts, B // bb)

    return pl.pallas_call(
        _pos_encoding_kernel,
        out_shape=jax.ShapeDtypeStruct((B, S, D), x.dtype),
        grid_spec=pltpu.PrefetchScalarGridSpec(
            num_scalar_prefetch=0,
            grid=grid,
            in_specs=[
                # per-step x tile: (bb, ts, D); last two dims are (ts, D)
                # with ts % 8 == 0 (or ts == S) and D == full dim -> legal.
                pl.BlockSpec((bb, ts, D), lambda j, i: (i, j, 0)),
                # table tile: constant across the fast batch axis -> not
                # re-DMA'd per batch step.
                pl.BlockSpec((ts, D), lambda j, i: (j, 0)),
            ],
            out_specs=pl.BlockSpec((bb, ts, D), lambda j, i: (i, j, 0)),
        ),
        compiler_params=pltpu.CompilerParams(
            # every output block is written exactly once and all steps are
            # independent -> megacore sharding on v7x, harmless on v5e/v6e.
            dimension_semantics=("parallel", "parallel"),
            vmem_limit_bytes=64 << 20,
        ),
    )(x, pos)


def _reference(x, pos_table):
    S = x.shape[1]
    return x + pos_table[None, :S, :].astype(x.dtype)


if __name__ == "__main__":
    key = jax.random.PRNGKey(0)

    batch, seq, dim = 2, 8, 32
    max_positions = 200

    x = jax.random.normal(key, (batch, seq, dim), jnp.float32)
    table = sinusoid_table(max_positions, dim, jnp.float32)

    out = positional_encoding(x, table)
    jax.block_until_ready(out)

    ref = _reference(x, table)
    assert out.shape == (batch, seq, dim)
    assert jnp.allclose(out, ref, atol=1e-6, rtol=1e-6)

    print("KERNEL_OK")
</pallas_src>

<mosaic_0001>
module attributes {stable_mosaic.version = 11 : i64} {
  func.func @_pos_encoding_kernel(%arg0: i32, %arg1: i32, %arg2: memref<2x8x32xf32, #tpu.memory_space<vmem>>, %arg3: memref<8x32xf32, #tpu.memory_space<vmem>>, %arg4: memref<2x8x32xf32, #tpu.memory_space<vmem>>) attributes {dimension_semantics = [#tpu.dimension_semantics<parallel>, #tpu.dimension_semantics<parallel>], iteration_bounds = array<i64: 1, 1>, scalar_prefetch = 0 : i64, scratch_operands = 0 : i64, tpu.core_type = #tpu.core_type<tc>, window_params = [{transform_indices = @transform_0, window_bounds = array<i64: 2, 8, 32>}, {transform_indices = @transform_1, window_bounds = array<i64: 8, 32>}, {transform_indices = @transform_2, window_bounds = array<i64: 2, 8, 32>}]} {
    %c0 = arith.constant 0 : index
    %c0_0 = arith.constant 0 : index
    %c0_1 = arith.constant 0 : index
    %0 = vector.load %arg2[%c0, %c0_0, %c0_1] : memref<2x8x32xf32, #tpu.memory_space<vmem>>, vector<2x8x32xf32>
    %c0_2 = arith.constant 0 : index
    %c0_3 = arith.constant 0 : index
    %1 = vector.load %arg3[%c0_2, %c0_3] : memref<8x32xf32, #tpu.memory_space<vmem>>, vector<8x32xf32>
    %2 = vector.shape_cast %1 : vector<8x32xf32> to vector<1x8x32xf32>
    %3 = vector.broadcast %2 : vector<1x8x32xf32> to vector<2x8x32xf32>
    %4 = arith.addf %0, %3 : vector<2x8x32xf32>
    %c0_4 = arith.constant 0 : index
    %c0_5 = arith.constant 0 : index
    %c0_6 = arith.constant 0 : index
    %5 = vector.load %arg4[%c0_4, %c0_5, %c0_6] : memref<2x8x32xf32, #tpu.memory_space<vmem>>, vector<2x8x32xf32>
    tpu.vector_store %arg4[%c0_4, %c0_5, %c0_6], %4 {strides = array<i32>} : memref<2x8x32xf32, #tpu.memory_space<vmem>>, vector<2x8x32xf32>,
    return
  }
  func.func @transform_0(%arg0: i32, %arg1: i32) -> (i32, i32, i32) {
    %c0_i32 = arith.constant 0 : i32
    %c0_i32_0 = arith.constant 0 : i32
    return %arg1, %arg0, %c0_i32 : i32, i32, i32
  }
  func.func @transform_1(%arg0: i32, %arg1: i32) -> (i32, i32) {
    %c0_i32 = arith.constant 0 : i32
    %c0_i32_0 = arith.constant 0 : i32
    return %arg0, %c0_i32 : i32, i32
  }
  func.func @transform_2(%arg0: i32, %arg1: i32) -> (i32, i32, i32) {
    %c0_i32 = arith.constant 0 : i32
    %c0_i32_0 = arith.constant 0 : i32
    return %arg1, %arg0, %c0_i32 : i32, i32, i32
  }
}

</mosaic_0001>

<llo_original>
// kernel: tpu_custom_call.1
$region0: #{tpu_custom_call.1}
  #allocation0 [shape = 'u32[]', space=smem, size = 0x4, offset = 0x4, fixed_abs, tag = 'smem constant byte address 0x4 - core index']
  #allocation1 [shape = 'u32[144,128]{1,0:T(1,128)}', space=vmem, size = 0x12000, scoped, tag = 'internal scratch']
  %s0 = inlined_call_operand.hbm [shape: f32[2,8,32], index: 0, kind: input, shape index: {}]
  %s1 = inlined_call_operand.hbm [shape: f32[8,32], index: 1, kind: input, shape index: {}]
  %s2 = inlined_call_operand.hbm [shape: f32[2,8,32], index: 2, kind: output, shape index: {}]
  %s3 = sld [smem:[#allocation0]]
  $region26: #{tpu_custom_call.1} parent=0
    _
  %s5 = ssub.s32 1, %s3
  %s6 = scalar_select 0, %s5, %s3
  $region1: #{tpu_custom_call.1} parent=0
    #allocation2 [shape = 'u8[8192]{0}', space=vmem, size = 0x2000, scoped, tag = 'input window, operand 0, single buffered']
    #allocation3 [shape = 's32[1]{0}', space=sflag, size = 0x4, scoped, tag = 'scoped memory for tpu_custom_call.1']
    #allocation4 [shape = 's32[1]{0}', space=sflag, size = 0x4, scoped, tag = 'scoped memory for tpu_custom_call.1']
    #allocation5 [shape = 'u8[4096]{0}', space=vmem, size = 0x1000, scoped, tag = 'input window, operand 1, single buffered']
    #allocation6 [shape = 's32[1]{0}', space=sflag, size = 0x4, scoped, tag = 'scoped memory for tpu_custom_call.1']
    #allocation7 [shape = 'u8[8192]{0}', space=vmem, size = 0x2000, scoped, tag = 'output window, operand 0, single buffered']
    %7 = vsyncpa [#allocation3], 0
    %8 = vsyncpa [#allocation6], 0
    %9 = vsyncpa [#allocation4], 0
    // Predicated region
    $region2: #{tpu_custom_call.1} parent=1 // pred_check
      _
    $region3: #{tpu_custom_call.1} parent=1 // pred_check_branch
      %11 = sbr.rel (0) target = $region5
    $region4: #{tpu_custom_call.1} parent=1 // pred_region
      %s13 = ssub.s32 256, 256
      %14 = vsyncadd [#allocation3], %s13
      %s15 = sshll.u32 [#allocation2], 4
      %s16 = int_to_ptr.vmem [resolvable:$true] %s15
      %21 = dma.hbm_to_vmem [thread:$0]  %s0, 256, %s16, [#allocation3], 128, 128, 8
    $region5: #{tpu_custom_call.1} parent=1 // pred_fallthru
      _
    // Predicated region
    $region6: #{tpu_custom_call.1} parent=1 // pred_check
      _
    $region7: #{tpu_custom_call.1} parent=1 // pred_check_branch
      %23 = sbr.rel (0) target = $region9
    $region8: #{tpu_custom_call.1} parent=1 // pred_region
      %s25 = ssub.s32 128, 128
      %26 = vsyncadd [#allocation6], %s25
      %s28 = sshll.u32 [#allocation5], 4
      %s29 = int_to_ptr.vmem [resolvable:$true] %s28
      %31 = dma.hbm_to_vmem [thread:$0]  %s1, 128, %s29, [#allocation6]
    $region9: #{tpu_custom_call.1} parent=1 // pred_fallthru
      _
    // Predicated region
    $region10: #{tpu_custom_call.1} parent=1 // pred_check
      _
    $region11: #{tpu_custom_call.1} parent=1 // pred_check_branch
      %33 = sbr.rel (0) target = $region13
    $region12: #{tpu_custom_call.1} parent=1 // pred_region
      %34 = dma.done [#allocation3], 256
    $region13: #{tpu_custom_call.1} parent=1 // pred_fallthru
      _
    // Predicated region
    $region14: #{tpu_custom_call.1} parent=1 // pred_check
      _
    $region15: #{tpu_custom_call.1} parent=1 // pred_check_branch
      %36 = sbr.rel (0) target = $region17
    $region16: #{tpu_custom_call.1} parent=1 // pred_region
      %37 = dma.done [#allocation6], 128
    $region17: #{tpu_custom_call.1} parent=1 // pred_fallthru
      _
    %v38 = vld [vmem:[#allocation2] sm:$0xff]
    %v39 = vld [vmem:[#allocation2 + $0x8] sm:$0xff]
    %v40 = vld [vmem:[#allocation5] sm:$0xff]
    %v41 = vadd.f32 %v38, %v40
    %v42 = vadd.f32 %v39, %v40
    %vm43 = vcmask 261120
    %44 = vst.msk [vmem:[#allocation7] sm:$0xff] %vm43, %v41
    %45 = vst.msk [vmem:[#allocation7 + $0x8] sm:$0xff] %vm43, %v42
    // Predicated region
    $region18: #{tpu_custom_call.1} parent=1 // pred_check
      _
    $region19: #{tpu_custom_call.1} parent=1 // pred_check_branch
      %47 = sbr.rel (0) target = $region21
    $region20: #{tpu_custom_call.1} parent=1 // pred_region
      %s49 = ssub.s32 256, 256
      %50 = vsyncadd [#allocation4], %s49
      %s51 = sshll.u32 [#allocation7], 4
      %s52 = int_to_ptr.vmem [resolvable:$true] %s51
      %57 = dma.vmem_to_hbm [thread:$0]  %s52, 256, %s2, [#allocation4], 128, 128, 8
    $region21: #{tpu_custom_call.1} parent=1 // pred_fallthru
      _
    // Predicated region
    $region22: #{tpu_custom_call.1} parent=1 // pred_check
      _
    $region23: #{tpu_custom_call.1} parent=1 // pred_check_branch
      %59 = sbr.rel (0) target = $region25
    $region24: #{tpu_custom_call.1} parent=1 // pred_region
      %60 = dma.done [#allocation4], 256
    $region25: #{tpu_custom_call.1} parent=1 // pred_fallthru
      _
    %61 = vsyncpa [#allocation3], 1
    %62 = vsyncpa [#allocation6], 1
    %63 = vsyncpa [#allocation4], 1

</llo_original>
